<compile_context>
chip_gen: v5e
topology: v5e:2x2
jax: 0.10.0
libtpu: 0.0.40
codegen_flags: <defaults>
</compile_context>

<pallas_src>
import functools

import jax
import jax.numpy as jnp
from jax import lax
from jax.experimental import pallas as pl
from jax.experimental.pallas import tpu as pltpu

LANE = 128
SUBLANE = 8
BN_EPS = 1e-5
ROW_CHUNK = 128            # in-kernel sub-chunk of the batch tile (vreg pressure)


def _round_up(n, m):
    return ((n + m - 1) // m) * m


# ---------------------------------------------------------------------------
# Fused kernel: the entire MLP in one pallas_call.
# refs = (x, w0, b0, w1, b1, ..., w_{L-1}, b_{L-1}, out)
# ---------------------------------------------------------------------------
def _make_fused_mlp_kernel(n_linear, tm):
    def kernel(*refs):
        x_ref = refs[0]
        o_ref = refs[-1]
        p_refs = refs[1:-1]
        # Process the (tm, K0) batch tile in <=128-row sub-chunks: the DMA tile
        # stays large (HBM roofline) while the per-chunk live set stays ~16
        # vregs, avoiding spills at tm = 256 / 512.
        r0 = 0
        while r0 < tm:
            rows = min(ROW_CHUNK, tm - r0)
            h = x_ref[pl.ds(r0, rows), :]                       # f32 activations
            for l in range(n_linear):
                w = p_refs[2 * l][...]                          # bf16, VMEM-resident
                b = p_refs[2 * l + 1][...]                      # f32 (1, n_pad)
                # single-pass bf16 MXU matmul, f32 accumulation + f32 epilogue
                h = jnp.dot(h.astype(w.dtype), w,
                            preferred_element_type=jnp.float32) + b
                if l < n_linear - 1:
                    h = jnp.maximum(h, 0.0)                     # ReLU (BN folded into next W,b)
            o_ref[pl.ds(r0, rows), :] = h.astype(o_ref.dtype)
            r0 += rows
    return kernel


def fused_mlp(x, flat_params, *, tm):
    """x: (M, K0) f32, unpadded.  flat_params: (w0, b0, w1, b1, ...) with
    bf16 weights whose output dims are 128-lane padded (layer-0 input dim raw)."""
    M, K0 = x.shape
    n_linear = len(flat_params) // 2
    n_out_pad = flat_params[-1].shape[-1]
    grid = (pl.cdiv(M, tm),)      # ragged last tile: OOB rows isolated, writes clipped

    in_specs = [pl.BlockSpec((tm, K0), lambda i: (i, 0))]       # streamed batch tile
    for l in range(n_linear):
        w, b = flat_params[2 * l], flat_params[2 * l + 1]
        # constant index_map -> fetched once; single buffer (no wasted 2nd copy)
        in_specs.append(pl.BlockSpec(w.shape, lambda i: (0, 0),
                                     pipeline_mode=pl.Buffered(1)))
        in_specs.append(pl.BlockSpec(b.shape, lambda i: (0, 0),
                                     pipeline_mode=pl.Buffered(1)))

    # VMEM budget: resident params (+headroom) and double-buffered x/out tiles.
    param_bytes = sum(int(a.size) * a.dtype.itemsize for a in flat_params)
    io_bytes = 2 * tm * K0 * 4 + 2 * tm * n_out_pad * 4
    need = 2 * param_bytes + io_bytes
    vmem_limit = int(min(60 * 1024 * 1024, max(32 * 1024 * 1024, 2 * need)))

    return pl.pallas_call(
        _make_fused_mlp_kernel(n_linear, tm),
        out_shape=jax.ShapeDtypeStruct((M, n_out_pad), jnp.float32),
        grid_spec=pltpu.PrefetchScalarGridSpec(
            num_scalar_prefetch=0,
            grid=grid,
            in_specs=in_specs,
            out_specs=pl.BlockSpec((tm, n_out_pad), lambda i: (i, 0)),
        ),
        compiler_params=pltpu.CompilerParams(
            dimension_semantics=("parallel",),   # batch tiles shard across TCs (v7x)
            vmem_limit_bytes=vmem_limit,
        ),
    )(x, *flat_params)


# ---------------------------------------------------------------------------
# Parameter construction / preparation
# ---------------------------------------------------------------------------
def init_mlp_params(key, num_layers, dims):
    """Deterministic synthetic parameters mirroring the PyTorch MLPBlock shapes.
    Hidden layers: Linear + BatchNorm1d (running stats, eval mode); last layer:
    plain Linear.  Weights stored pre-transposed as (in, out)."""
    params = []
    for i in range(num_layers - 2):
        key, kw, kb, kg, kbeta, km, kv = jax.random.split(key, 7)
        d_in, d_out = dims[i], dims[i + 1]
        params.append(dict(
            w=jax.random.normal(kw, (d_in, d_out), jnp.float32) / jnp.sqrt(d_in),
            b=0.1 * jax.random.normal(kb, (1, d_out), jnp.float32),
            gamma=1.0 + 0.1 * jax.random.normal(kg, (1, d_out), jnp.float32),
            beta=0.1 * jax.random.normal(kbeta, (1, d_out), jnp.float32),
            mean=0.1 * jax.random.normal(km, (1, d_out), jnp.float32),
            var=jnp.abs(1.0 + 0.1 * jax.random.normal(kv, (1, d_out), jnp.float32)),
        ))
    key, kw, kb = jax.random.split(key, 3)
    d_in, d_out = dims[-2], dims[-1]
    params.append(dict(
        w=jax.random.normal(kw, (d_in, d_out), jnp.float32) / jnp.sqrt(d_in),
        b=0.1 * jax.random.normal(kb, (1, d_out), jnp.float32),
    ))
    return params


def prepare_kernel_params(params, param_dtype=jnp.bfloat16):
    """Fold eval-mode BN affine of each hidden layer into the following Linear,
    pad every *output* dim to a multiple of 128 lanes (layer-0 input dim kept
    raw so x needs no padding), and cast weights to bf16 for single-pass MXU
    matmuls.  Returns a flat tuple (w0, b0, w1, b1, ...) of arrays (jit-safe)."""
    folded = []
    pending_scale = pending_shift = None
    for layer in params:
        w, b = layer["w"], layer["b"]
        if pending_scale is not None:
            # (y*scale + shift) @ w + b  ==  y @ (scale[:,None]*w) + (shift @ w + b)
            b = b + pending_shift @ w
            w = pending_scale.reshape(-1, 1) * w
            pending_scale = pending_shift = None
        if "gamma" in layer:
            scale = layer["gamma"] / jnp.sqrt(layer["var"] + BN_EPS)
            shift = layer["beta"] - layer["mean"] * scale
            pending_scale, pending_shift = scale, shift
        folded.append((w, b))

    flat = []
    k_in = folded[0][0].shape[0]          # raw input dim -> x is never padded
    for w, b in folded:
        d_in, d_out = w.shape
        n_pad = _round_up(d_out, LANE)
        # zero padding keeps padded lanes exactly 0 through bias, ReLU and the
        # zeroed rows of the next weight
        w_pad = jnp.zeros((k_in, n_pad), jnp.float32).at[:d_in, :d_out].set(w)
        b_pad = jnp.zeros((1, n_pad), jnp.float32).at[:, :d_out].set(b)
        flat += [w_pad.astype(param_dtype), b_pad]
        k_in = n_pad
    return tuple(flat)


# ---------------------------------------------------------------------------
# Forward (jitted; only arrays + a static int cross the jit boundary)
# ---------------------------------------------------------------------------
def _choose_tm(M):
    """Rows per batch tile.  Full batch for small M (grid=1, legal via the
    'block == full dim' exception).  For M > 256: an even number of <=512-row
    tiles so grid >= 2 (both v7x TensorCores busy) and the stream amortizes
    per-grid-step overhead."""
    if M <= 256:
        return M
    n_tiles = 2 * (-(-M // 1024))                 # 2 * ceil(M / 1024)
    return _round_up(-(-M // n_tiles), SUBLANE)   # round_up(ceil(M / n_tiles), 8)


@functools.partial(jax.jit, static_argnames=("out_dim",))
def mlp_block_forward(x, kernel_params, *, out_dim):
    x = x.astype(jnp.float32)
    tm = _choose_tm(x.shape[0])
    y_pad = fused_mlp(x, tuple(kernel_params), tm=tm)
    return y_pad[:, :out_dim]


def mlp_block_reference(x, params):
    """Pure-JAX f32 reference with the original (unfolded, unpadded) parameters."""
    h = x
    for layer in params:
        h = jnp.dot(h, layer["w"], precision=lax.Precision.HIGHEST) + layer["b"]
        if "gamma" in layer:
            h = jnp.maximum(h, 0.0)
            scale = layer["gamma"] / jnp.sqrt(layer["var"] + BN_EPS)
            h = h * scale + (layer["beta"] - layer["mean"] * scale)
    return h


# ---------------------------------------------------------------------------
# Demo
# ---------------------------------------------------------------------------
if __name__ == "__main__":
    num_layers = 4
    dims = [32, 64, 48, 16]   # Linear(32,64)+ReLU+BN, Linear(64,48)+ReLU+BN, Linear(48,16)
    batch = 16

    key = jax.random.PRNGKey(0)
    kx, kp = jax.random.split(key)
    x = jax.random.normal(kx, (batch, dims[0]), jnp.float32)
    params = init_mlp_params(kp, num_layers, dims)
    kernel_params = prepare_kernel_params(params)

    out = mlp_block_forward(x, kernel_params, out_dim=dims[-1])
    out = jax.block_until_ready(out)

    ref = mlp_block_reference(x, params)
    assert out.shape == (batch, dims[-1])
    # bf16 MXU matmuls vs f32 reference -> tolerance loosened from 1e-3 to 2e-2.
    assert jnp.allclose(out, ref, atol=2e-2, rtol=2e-2), "mismatch vs JAX reference"

    print("KERNEL_OK")
</pallas_src>

<mosaic_0001>
module attributes {stable_mosaic.version = 11 : i64} {
  func.func @kernel(%arg0: i32, %arg1: memref<16x32xf32, #tpu.memory_space<vmem>>, %arg2: memref<32x128xbf16, #tpu.memory_space<vmem>>, %arg3: memref<1x128xf32, #tpu.memory_space<vmem>>, %arg4: memref<128x128xbf16, #tpu.memory_space<vmem>>, %arg5: memref<1x128xf32, #tpu.memory_space<vmem>>, %arg6: memref<128x128xbf16, #tpu.memory_space<vmem>>, %arg7: memref<1x128xf32, #tpu.memory_space<vmem>>, %arg8: memref<16x128xf32, #tpu.memory_space<vmem>>) attributes {dimension_semantics = [#tpu.dimension_semantics<parallel>], iteration_bounds = array<i64: 1>, scalar_prefetch = 0 : i64, scratch_operands = 0 : i64, tpu.core_type = #tpu.core_type<tc>, window_params = [{transform_indices = @transform_0, window_bounds = array<i64: 16, 32>}, {pipeline_mode = #tpu.pipeline_mode<synchronous>, transform_indices = @transform_1, window_bounds = array<i64: 32, 128>}, {pipeline_mode = #tpu.pipeline_mode<synchronous>, transform_indices = @transform_2, window_bounds = array<i64: 1, 128>}, {pipeline_mode = #tpu.pipeline_mode<synchronous>, transform_indices = @transform_3, window_bounds = array<i64: 128, 128>}, {pipeline_mode = #tpu.pipeline_mode<synchronous>, transform_indices = @transform_4, window_bounds = array<i64: 1, 128>}, {pipeline_mode = #tpu.pipeline_mode<synchronous>, transform_indices = @transform_5, window_bounds = array<i64: 128, 128>}, {pipeline_mode = #tpu.pipeline_mode<synchronous>, transform_indices = @transform_6, window_bounds = array<i64: 1, 128>}, {transform_indices = @transform_7, window_bounds = array<i64: 16, 128>}]} {
    %c0 = arith.constant 0 : index
    %c0_0 = arith.constant 0 : index
    %0 = vector.load %arg1[%c0, %c0_0] : memref<16x32xf32, #tpu.memory_space<vmem>>, vector<16x32xf32>
    %c0_1 = arith.constant 0 : index
    %c0_2 = arith.constant 0 : index
    %1 = vector.load %arg2[%c0_1, %c0_2] : memref<32x128xbf16, #tpu.memory_space<vmem>>, vector<32x128xbf16>
    %c0_3 = arith.constant 0 : index
    %c0_4 = arith.constant 0 : index
    %2 = vector.load %arg3[%c0_3, %c0_4] : memref<1x128xf32, #tpu.memory_space<vmem>>, vector<1x128xf32>
    %3 = arith.truncf %0 : vector<16x32xf32> to vector<16x32xbf16>
    %cst = arith.constant dense<0.000000e+00> : vector<16x128xf32>
    %4 = tpu.matmul %3, %1, %cst {dimension_numbers = #tpu.dot_dimension_numbers<[1], [0], [0], [1], [0, 0, 1, 1], [], []>} : vector<16x32xbf16>, vector<32x128xbf16>, vector<16x128xf32> -> vector<16x128xf32>
    %5 = vector.broadcast %2 : vector<1x128xf32> to vector<16x128xf32>
    %6 = arith.addf %4, %5 : vector<16x128xf32>
    %cst_5 = arith.constant 0.000000e+00 : f32
    %7 = vector.broadcast %cst_5 : f32 to vector<16x128xf32>
    %8 = arith.maximumf %6, %7 : vector<16x128xf32>
    %c0_6 = arith.constant 0 : index
    %c0_7 = arith.constant 0 : index
    %9 = vector.load %arg4[%c0_6, %c0_7] : memref<128x128xbf16, #tpu.memory_space<vmem>>, vector<128x128xbf16>
    %c0_8 = arith.constant 0 : index
    %c0_9 = arith.constant 0 : index
    %10 = vector.load %arg5[%c0_8, %c0_9] : memref<1x128xf32, #tpu.memory_space<vmem>>, vector<1x128xf32>
    %11 = arith.truncf %8 : vector<16x128xf32> to vector<16x128xbf16>
    %cst_10 = arith.constant dense<0.000000e+00> : vector<16x128xf32>
    %12 = tpu.matmul %11, %9, %cst_10 {dimension_numbers = #tpu.dot_dimension_numbers<[1], [0], [0], [1], [0, 0, 1, 1], [], []>} : vector<16x128xbf16>, vector<128x128xbf16>, vector<16x128xf32> -> vector<16x128xf32>
    %13 = vector.broadcast %10 : vector<1x128xf32> to vector<16x128xf32>
    %14 = arith.addf %12, %13 : vector<16x128xf32>
    %cst_11 = arith.constant 0.000000e+00 : f32
    %15 = vector.broadcast %cst_11 : f32 to vector<16x128xf32>
    %16 = arith.maximumf %14, %15 : vector<16x128xf32>
    %c0_12 = arith.constant 0 : index
    %c0_13 = arith.constant 0 : index
    %17 = vector.load %arg6[%c0_12, %c0_13] : memref<128x128xbf16, #tpu.memory_space<vmem>>, vector<128x128xbf16>
    %c0_14 = arith.constant 0 : index
    %c0_15 = arith.constant 0 : index
    %18 = vector.load %arg7[%c0_14, %c0_15] : memref<1x128xf32, #tpu.memory_space<vmem>>, vector<1x128xf32>
    %19 = arith.truncf %16 : vector<16x128xf32> to vector<16x128xbf16>
    %cst_16 = arith.constant dense<0.000000e+00> : vector<16x128xf32>
    %20 = tpu.matmul %19, %17, %cst_16 {dimension_numbers = #tpu.dot_dimension_numbers<[1], [0], [0], [1], [0, 0, 1, 1], [], []>} : vector<16x128xbf16>, vector<128x128xbf16>, vector<16x128xf32> -> vector<16x128xf32>
    %21 = vector.broadcast %18 : vector<1x128xf32> to vector<16x128xf32>
    %22 = arith.addf %20, %21 : vector<16x128xf32>
    %c0_17 = arith.constant 0 : index
    %c0_18 = arith.constant 0 : index
    %23 = vector.load %arg8[%c0_17, %c0_18] : memref<16x128xf32, #tpu.memory_space<vmem>>, vector<16x128xf32>
    tpu.vector_store %arg8[%c0_17, %c0_18], %22 {strides = array<i32>} : memref<16x128xf32, #tpu.memory_space<vmem>>, vector<16x128xf32>,
    return
  }
  func.func @transform_0(%arg0: i32) -> (i32, i32) {
    %c0_i32 = arith.constant 0 : i32
    %c0_i32_0 = arith.constant 0 : i32
    return %arg0, %c0_i32 : i32, i32
  }
  func.func @transform_1(%arg0: i32) -> (i32, i32) {
    %c0_i32 = arith.constant 0 : i32
    %c0_i32_0 = arith.constant 0 : i32
    %c0_i32_1 = arith.constant 0 : i32
    return %c0_i32, %c0_i32_0 : i32, i32
  }
  func.func @transform_2(%arg0: i32) -> (i32, i32) {
    %c0_i32 = arith.constant 0 : i32
    %c0_i32_0 = arith.constant 0 : i32
    %c0_i32_1 = arith.constant 0 : i32
    return %c0_i32, %c0_i32_0 : i32, i32
  }
  func.func @transform_3(%arg0: i32) -> (i32, i32) {
    %c0_i32 = arith.constant 0 : i32
    %c0_i32_0 = arith.constant 0 : i32
    %c0_i32_1 = arith.constant 0 : i32
    return %c0_i32, %c0_i32_0 : i32, i32
  }
  func.func @transform_4(%arg0: i32) -> (i32, i32) {
    %c0_i32 = arith.constant 0 : i32
    %c0_i32_0 = arith.constant 0 : i32
    %c0_i32_1 = arith.constant 0 : i32
    return %c0_i32, %c0_i32_0 : i32, i32
  }
  func.func @transform_5(%arg0: i32) -> (i32, i32) {
    %c0_i32 = arith.constant 0 : i32
    %c0_i32_0 = arith.constant 0 : i32
    %c0_i32_1 = arith.constant 0 : i32
    return %c0_i32, %c0_i32_0 : i32, i32
  }
  func.func @transform_6(%arg0: i32) -> (i32, i32) {
    %c0_i32 = arith.constant 0 : i32
    %c0_i32_0 = arith.constant 0 : i32
    %c0_i32_1 = arith.constant 0 : i32
    return %c0_i32, %c0_i32_0 : i32, i32
  }
  func.func @transform_7(%arg0: i32) -> (i32, i32) {
    %c0_i32 = arith.constant 0 : i32
    %c0_i32_0 = arith.constant 0 : i32
    return %arg0, %c0_i32 : i32, i32
  }
}

</mosaic_0001>

<llo_original>
// kernel: mlp_block_forward.1
$region0: #{mlp_block_forward.1}
  #allocation0 [shape = 'u32[]', space=smem, size = 0x4, offset = 0x4, fixed_abs, tag = 'smem constant byte address 0x4 - core index']
  #allocation1 [shape = 'u32[72,128]{1,0:T(1,128)}', space=vmem, size = 0x9000, scoped, tag = 'internal scratch']
  %s0 = inlined_call_operand.hbm [shape: f32[16,32], index: 0, kind: input, shape index: {}]
  %s1 = inlined_call_operand.hbm [shape: bf16[32,128], index: 1, kind: input, shape index: {}]
  %s2 = inlined_call_operand.vmem [shape: f32[1,128], index: 2, kind: input, shape index: {}]
  %s3 = inlined_call_operand.hbm [shape: bf16[128,128], index: 3, kind: input, shape index: {}]
  %s4 = inlined_call_operand.vmem [shape: f32[1,128], index: 4, kind: input, shape index: {}]
  %s5 = inlined_call_operand.hbm [shape: bf16[128,128], index: 5, kind: input, shape index: {}]
  %s6 = inlined_call_operand.vmem [shape: f32[1,128], index: 6, kind: input, shape index: {}]
  %s7 = inlined_call_operand.hbm [shape: f32[16,128], index: 7, kind: output, shape index: {}]
  %s8 = sld [smem:[#allocation0]]
  $region54: #{mlp_block_forward.1} parent=0
    _
  %s10 = ssub.s32 1, %s8
  %s11 = scalar_select 0, %s10, %s8
  $region1: #{mlp_block_forward.1} parent=0
    #allocation2 [shape = 'u8[8192]{0}', space=vmem, size = 0x2000, scoped, tag = 'input window, operand 0, single buffered']
    #allocation3 [shape = 's32[1]{0}', space=sflag, size = 0x4, scoped, tag = 'scoped memory for mlp_block_forward.1']
    #allocation4 [shape = 's32[1]{0}', space=sflag, size = 0x4, scoped, tag = 'scoped memory for mlp_block_forward.1']
    #allocation5 [shape = 'u8[8192]{0}', space=vmem, size = 0x2000, scoped, tag = 'input window, operand 1, single buffered']
    #allocation6 [shape = 's32[1]{0}', space=sflag, size = 0x4, scoped, tag = 'scoped memory for mlp_block_forward.1']
    #allocation7 [shape = 'u8[32768]{0}', space=vmem, size = 0x8000, scoped, tag = 'input window, operand 3, single buffered']
    #allocation8 [shape = 'u8[32768]{0}', space=vmem, size = 0x8000, scoped, tag = 'input window, operand 5, single buffered']
    #allocation9 [shape = 's32[1]{0}', space=sflag, size = 0x4, scoped, tag = 'scoped memory for mlp_block_forward.1']
    #allocation10 [shape = 'u8[8192]{0}', space=vmem, size = 0x2000, scoped, tag = 'output window, operand 0, single buffered']
    %12 = vsyncpa [#allocation3], 0
    %13 = vsyncpa [#allocation6], 0
    %14 = vsyncpa [#allocation9], 0
    %15 = vsyncpa [#allocation4], 0
    // Predicated region
    $region2: #{mlp_block_forward.1} parent=1 // pred_check
      _
    $region3: #{mlp_block_forward.1} parent=1 // pred_check_branch
      %17 = sbr.rel (0) target = $region5
    $region4: #{mlp_block_forward.1} parent=1 // pred_region
      %19 = vsyncadd [#allocation3], 0
      %s20 = sshll.u32 %s0, 4
      %s21 = int_to_ptr.hbm [resolvable:$true] %s20
      %s22 = sshll.u32 [#allocation2], 4
      %s23 = int_to_ptr.vmem [resolvable:$true] %s22
      %28 = dma.hbm_to_vmem [thread:$0]  %s21, 256, %s23, [#allocation3], 128, 128, 8
    $region5: #{mlp_block_forward.1} parent=1 // pred_fallthru
      _
    // Predicated region
    $region6: #{mlp_block_forward.1} parent=1 // pred_check
      _
    $region7: #{mlp_block_forward.1} parent=1 // pred_check_branch
      %30 = sbr.rel (0) target = $region9
    $region8: #{mlp_block_forward.1} parent=1 // pred_region
      %32 = vsyncadd [#allocation6], 0
      %s33 = sshll.u32 %s1, 4
      %s34 = int_to_ptr.hbm [resolvable:$true] %s33
      %s35 = sshll.u32 [#allocation5], 4
      %s36 = int_to_ptr.vmem [resolvable:$true] %s35
      %41 = dma.hbm_to_vmem [thread:$0]  %s34, 256, %s36, [#allocation6], 64, 64, 4
    $region9: #{mlp_block_forward.1} parent=1 // pred_fallthru
      _
    // Predicated region
    $region10: #{mlp_block_forward.1} parent=1 // pred_check
      _
    $region11: #{mlp_block_forward.1} parent=1 // pred_check_branch
      %43 = sbr.rel (0) target = $region13
    $region12: #{mlp_block_forward.1} parent=1 // pred_region
      _
    $region13: #{mlp_block_forward.1} parent=1 // pred_fallthru
      _
    // Predicated region
    $region14: #{mlp_block_forward.1} parent=1 // pred_check
      _
    $region15: #{mlp_block_forward.1} parent=1 // pred_check_branch
      %45 = sbr.rel (0) target = $region17
    $region16: #{mlp_block_forward.1} parent=1 // pred_region
      %47 = vsyncadd [#allocation6], 0
      %s48 = sshll.u32 %s3, 4
      %s49 = int_to_ptr.hbm [resolvable:$true] %s48
      %s50 = sshll.u32 [#allocation7], 4
      %s51 = int_to_ptr.vmem [resolvable:$true] %s50
      %56 = dma.hbm_to_vmem [thread:$0]  %s49, 1024, %s51, [#allocation6], 64, 64, 4
    $region17: #{mlp_block_forward.1} parent=1 // pred_fallthru
      _
    // Predicated region
    $region18: #{mlp_block_forward.1} parent=1 // pred_check
      _
    $region19: #{mlp_block_forward.1} parent=1 // pred_check_branch
      %58 = sbr.rel (0) target = $region21
    $region20: #{mlp_block_forward.1} parent=1 // pred_region
      _
    $region21: #{mlp_block_forward.1} parent=1 // pred_fallthru
      _
    // Predicated region
    $region22: #{mlp_block_forward.1} parent=1 // pred_check
      _
    $region23: #{mlp_block_forward.1} parent=1 // pred_check_branch
      %60 = sbr.rel (0) target = $region25
    $region24: #{mlp_block_forward.1} parent=1 // pred_region
      %62 = vsyncadd [#allocation9], 0
      %s63 = sshll.u32 %s5, 4
      %s64 = int_to_ptr.hbm [resolvable:$true] %s63
      %s65 = sshll.u32 [#allocation8], 4
      %s66 = int_to_ptr.vmem [resolvable:$true] %s65
      %71 = dma.hbm_to_vmem [thread:$0]  %s64, 1024, %s66, [#allocation9], 64, 64, 4
    $region25: #{mlp_block_forward.1} parent=1 // pred_fallthru
      _
    // Predicated region
    $region26: #{mlp_block_forward.1} parent=1 // pred_check
      _
    $region27: #{mlp_block_forward.1} parent=1 // pred_check_branch
      %73 = sbr.rel (0) target = $region29
    $region28: #{mlp_block_forward.1} parent=1 // pred_region
      _
    $region29: #{mlp_block_forward.1} parent=1 // pred_fallthru
      _
    // Predicated region
    $region30: #{mlp_block_forward.1} parent=1 // pred_check
      _
    $region31: #{mlp_block_forward.1} parent=1 // pred_check_branch
      %75 = sbr.rel (0) target = $region33
    $region32: #{mlp_block_forward.1} parent=1 // pred_region
      %77 = dma.done [#allocation3], 256
    $region33: #{mlp_block_forward.1} parent=1 // pred_fallthru
      _
    // Predicated region
    $region34: #{mlp_block_forward.1} parent=1 // pred_check
      _
    $region35: #{mlp_block_forward.1} parent=1 // pred_check_branch
      %79 = sbr.rel (0) target = $region37
    $region36: #{mlp_block_forward.1} parent=1 // pred_region
      %81 = dma.done [#allocation6], 256
    $region37: #{mlp_block_forward.1} parent=1 // pred_fallthru
      _
    // Predicated region
    $region38: #{mlp_block_forward.1} parent=1 // pred_check
      _
    $region39: #{mlp_block_forward.1} parent=1 // pred_check_branch
      %83 = sbr.rel (0) target = $region41
    $region40: #{mlp_block_forward.1} parent=1 // pred_region
      %85 = dma.done [#allocation6], 1024
    $region41: #{mlp_block_forward.1} parent=1 // pred_fallthru
      _
    // Predicated region
    $region42: #{mlp_block_forward.1} parent=1 // pred_check
      _
    $region43: #{mlp_block_forward.1} parent=1 // pred_check_branch
      %87 = sbr.rel (0) target = $region45
    $region44: #{mlp_block_forward.1} parent=1 // pred_region
      %89 = dma.done [#allocation9], 1024
    $region45: #{mlp_block_forward.1} parent=1 // pred_fallthru
      _
    %v91 = vld [vmem:[#allocation2] sm:$0xff]
    %v92 = vld [vmem:[#allocation2 + $0x8] sm:$0xff]
    %v93 = vld [vmem:[#allocation5] sm:$0xf]
    %v94 = vld [vmem:[#allocation5 + $0x4] sm:$0xf]
    %v95 = vld [vmem:[#allocation5 + $0x8] sm:$0xf]
    %v96 = vld [vmem:[#allocation5 + $0xc] sm:$0xf]
    %v97 = vld [vmem:[%s2] sm:$0x1]
    %v98 = vpack.c.bf16 %v92, %v91
    %v100 = vperm.slane %v97, 0
    %v106 = vunpack.c.l.b16 %v93
    %v107 = vunpack.c.l.b16 %v94
    %v108 = vunpack.c.l.b16 %v95
    %v109 = vunpack.c.l.b16 %v96
    %v110 = vpack.c.b16 %v107, %v106
    %v111 = vpack.c.b16 %v109, %v108
    %vm114 = vcmask 261120
    %v116 = vsel %vm114, %v98, 0
    %118 = vmatpush.bf16.msra.mxu0 0
    %119 = vmatpush.bf16.msra.mxu0 0
    %120 = vmatpush.bf16.msra.mxu0 0
    %121 = vmatpush.bf16.msra.mxu0 0
    %122 = vmatpush.bf16.msra.mxu0 0
    %123 = vmatpush.bf16.msra.mxu0 0
    %124 = vmatpush.bf16.msra.mxu0 %v111
    %125 = vmatpush.bf16.msra.mxu0 %v110
    %126 = vmatmul.bf16.gmra.mxu0 %v116
    %v127 = vpop.f32.mrf.mxu0
    %v128 = vadd.f32 %v100, %v127
    %v129 = vpop.f32.mrf.mxu0
    %v130 = vadd.f32 %v100, %v129
    %131 = vdwg.mxu0
    %v132 = vmax.f32 %v128, 0.0
    %v133 = vmax.f32 %v130, 0.0
    %v134 = vld [vmem:[#allocation7] sm:$0xf]
    %v135 = vld [vmem:[#allocation7 + $0x4] sm:$0xf]
    %v136 = vld [vmem:[#allocation7 + $0x8] sm:$0xf]
    %v137 = vld [vmem:[#allocation7 + $0xc] sm:$0xf]
    %v138 = vld [vmem:[#allocation7 + $0x10] sm:$0xf]
    %v139 = vld [vmem:[#allocation7 + $0x14] sm:$0xf]
    %v140 = vld [vmem:[#allocation7 + $0x18] sm:$0xf]
    %v141 = vld [vmem:[#allocation7 + $0x1c] sm:$0xf]
    %v142 = vld [vmem:[#allocation7 + $0x20] sm:$0xf]
    %v143 = vld [vmem:[#allocation7 + $0x24] sm:$0xf]
    %v144 = vld [vmem:[#allocation7 + $0x28] sm:$0xf]
    %v145 = vld [vmem:[#allocation7 + $0x2c] sm:$0xf]
    %v146 = vld [vmem:[#allocation7 + $0x30] sm:$0xf]
    %v147 = vld [vmem:[#allocation7 + $0x34] sm:$0xf]
    %v148 = vld [vmem:[#allocation7 + $0x38] sm:$0xf]
    %v149 = vld [vmem:[#allocation7 + $0x3c] sm:$0xf]
    %v150 = vld [vmem:[%s4] sm:$0x1]
    %v151 = vpack.c.bf16 %v133, %v132
    %v153 = vperm.slane %v150, 0
    %v171 = vunpack.c.l.b16 %v134
    %v172 = vunpack.c.l.b16 %v135
    %v173 = vunpack.c.l.b16 %v136
    %v174 = vunpack.c.l.b16 %v137
    %v175 = vunpack.c.l.b16 %v138
    %v176 = vunpack.c.l.b16 %v139
    %v177 = vunpack.c.l.b16 %v140
    %v178 = vunpack.c.l.b16 %v141
    %v179 = vunpack.c.l.b16 %v142
    %v180 = vunpack.c.l.b16 %v143
    %v181 = vunpack.c.l.b16 %v144
    %v182 = vunpack.c.l.b16 %v145
    %v183 = vunpack.c.l.b16 %v146
    %v184 = vunpack.c.l.b16 %v147
    %v185 = vunpack.c.l.b16 %v148
    %v186 = vunpack.c.l.b16 %v149
    %v187 = vpack.c.b16 %v172, %v171
    %v188 = vpack.c.b16 %v174, %v173
    %v189 = vpack.c.b16 %v176, %v175
    %v190 = vpack.c.b16 %v178, %v177
    %v191 = vpack.c.b16 %v180, %v179
    %v192 = vpack.c.b16 %v182, %v181
    %v193 = vpack.c.b16 %v184, %v183
    %v194 = vpack.c.b16 %v186, %v185
    %203 = vmatpush.bf16.msra.mxu0 %v194
    %204 = vmatpush.bf16.msra.mxu0 %v193
    %205 = vmatpush.bf16.msra.mxu0 %v192
    %206 = vmatpush.bf16.msra.mxu0 %v191
    %207 = vmatpush.bf16.msra.mxu0 %v190
    %208 = vmatpush.bf16.msra.mxu0 %v189
    %209 = vmatpush.bf16.msra.mxu0 %v188
    %210 = vmatpush.bf16.msra.mxu0 %v187
    %211 = vmatmul.bf16.gmra.mxu0 %v151
    %v212 = vpop.f32.mrf.mxu0
    %v213 = vadd.f32 %v153, %v212
    %v214 = vpop.f32.mrf.mxu0
    %v215 = vadd.f32 %v153, %v214
    %216 = vdwg.mxu0
    %v217 = vmax.f32 %v213, 0.0
    %v218 = vmax.f32 %v215, 0.0
    %v219 = vld [vmem:[#allocation8] sm:$0xf]
    %v220 = vld [vmem:[#allocation8 + $0x4] sm:$0xf]
    %v221 = vld [vmem:[#allocation8 + $0x8] sm:$0xf]
    %v222 = vld [vmem:[#allocation8 + $0xc] sm:$0xf]
    %v223 = vld [vmem:[#allocation8 + $0x10] sm:$0xf]
    %v224 = vld [vmem:[#allocation8 + $0x14] sm:$0xf]
    %v225 = vld [vmem:[#allocation8 + $0x18] sm:$0xf]
    %v226 = vld [vmem:[#allocation8 + $0x1c] sm:$0xf]
    %v227 = vld [vmem:[#allocation8 + $0x20] sm:$0xf]
    %v228 = vld [vmem:[#allocation8 + $0x24] sm:$0xf]
    %v229 = vld [vmem:[#allocation8 + $0x28] sm:$0xf]
    %v230 = vld [vmem:[#allocation8 + $0x2c] sm:$0xf]
    %v231 = vld [vmem:[#allocation8 + $0x30] sm:$0xf]
    %v232 = vld [vmem:[#allocation8 + $0x34] sm:$0xf]
    %v233 = vld [vmem:[#allocation8 + $0x38] sm:$0xf]
    %v234 = vld [vmem:[#allocation8 + $0x3c] sm:$0xf]
    %v235 = vld [vmem:[%s6] sm:$0x1]
    %v236 = vpack.c.bf16 %v218, %v217
    %v238 = vperm.slane %v235, 0
    %v256 = vunpack.c.l.b16 %v219
    %v257 = vunpack.c.l.b16 %v220
    %v258 = vunpack.c.l.b16 %v221
    %v259 = vunpack.c.l.b16 %v222
    %v260 = vunpack.c.l.b16 %v223
    %v261 = vunpack.c.l.b16 %v224
    %v262 = vunpack.c.l.b16 %v225
    %v263 = vunpack.c.l.b16 %v226
    %v264 = vunpack.c.l.b16 %v227
    %v265 = vunpack.c.l.b16 %v228
    %v266 = vunpack.c.l.b16 %v229
    %v267 = vunpack.c.l.b16 %v230
    %v268 = vunpack.c.l.b16 %v231
    %v269 = vunpack.c.l.b16 %v232
    %v270 = vunpack.c.l.b16 %v233
    %v271 = vunpack.c.l.b16 %v234
    %v272 = vpack.c.b16 %v257, %v256
    %v273 = vpack.c.b16 %v259, %v258
    %v274 = vpack.c.b16 %v261, %v260
    %v275 = vpack.c.b16 %v263, %v262
    %v276 = vpack.c.b16 %v265, %v264
    %v277 = vpack.c.b16 %v267, %v266
    %v278 = vpack.c.b16 %v269, %v268
    %v279 = vpack.c.b16 %v271, %v270
    %288 = vmatpush.bf16.msra.mxu0 %v279
    %289 = vmatpush.bf16.msra.mxu0 %v278
    %290 = vmatpush.bf16.msra.mxu0 %v277
    %291 = vmatpush.bf16.msra.mxu0 %v276
    %292 = vmatpush.bf16.msra.mxu0 %v275
    %293 = vmatpush.bf16.msra.mxu0 %v274
    %294 = vmatpush.bf16.msra.mxu0 %v273
    %295 = vmatpush.bf16.msra.mxu0 %v272
    %296 = vmatmul.bf16.gmra.mxu0 %v236
    %v297 = vpop.f32.mrf.mxu0
    %v298 = vadd.f32 %v238, %v297
    %v299 = vpop.f32.mrf.mxu0
    %v300 = vadd.f32 %v238, %v299
    %301 = vdwg.mxu0
    %302 = vst [vmem:[#allocation10] sm:$0xff] %v298
    %303 = vst [vmem:[#allocation10 + $0x8] sm:$0xff] %v300
    // Predicated region
    $region46: #{mlp_block_forward.1} parent=1 // pred_check
      _
    $region47: #{mlp_block_forward.1} parent=1 // pred_check_branch
      %305 = sbr.rel (0) target = $region49
    $region48: #{mlp_block_forward.1} parent=1 // pred_region
      %307 = vsyncadd [#allocation4], 0
      %s308 = sshll.u32 [#allocation10], 4
      %s309 = int_to_ptr.vmem [resolvable:$true] %s308
      %s310 = sshll.u32 %s7, 4
      %s311 = int_to_ptr.hbm [resolvable:$true] %s310
      %316 = dma.vmem_to_hbm [thread:$0]  %s309, 256, %s311, [#allocation4], 128, 128, 8
    $region49: #{mlp_block_forward.1} parent=1 // pred_fallthru
      _
    // Predicated region
    $region50: #{mlp_block_forward.1} parent=1 // pred_check
      _
    $region51: #{mlp_block_forward.1} parent=1 // pred_check_branch
      %318 = sbr.rel (0) target = $region53
    $region52: #{mlp_block_forward.1} parent=1 // pred_region
      %320 = dma.done [#allocation4], 256
    $region53: #{mlp_block_forward.1} parent=1 // pred_fallthru
      _
    %321 = vsyncpa [#allocation3], 1
    %322 = vsyncpa [#allocation6], 1
    %323 = vsyncpa [#allocation9], 1
    %324 = vsyncpa [#allocation4], 1

</llo_original>
